<compile_context>
chip_gen: v5e
topology: v5e:2x2
jax: 0.10.0
libtpu: 0.0.40
codegen_flags: <defaults>
</compile_context>

<pallas_src>
import jax
import jax.numpy as jnp
from jax.experimental import pallas as pl
from jax.experimental.pallas import tpu as pltpu


def ensemble_kernel(x_ref, w1_ref, b1_ref, w2_ref, b2_ref, o_ref):
    # x_ref : (Bt, H)        batch tile
    # w1_ref: (H, M*D)       all first-layer weights packed along lanes
    # b1_ref: (1, M*D)       all first-layer biases packed
    # w2_ref: (1, M*D)       second-layer weights flattened and pre-scaled by 1/M
    # b2_ref: (1, 1)         mean of second-layer biases
    # o_ref : (Bt, 1)
    x = x_ref[...]

    # Layer 1 for all M models at once: one wide MXU matmul.
    h = jnp.dot(x, w1_ref[...], preferred_element_type=jnp.float32) + b1_ref[...]
    h = jnp.maximum(h, 0.0)  # ReLU (VPU)

    # Layer 2 + ensemble mean: VPU multiply + XLU lane reduce (no N=1 matmul).
    y = jnp.sum(h * w2_ref[...], axis=-1, keepdims=True) + b2_ref[...]

    o_ref[...] = y.astype(o_ref.dtype)


def averaging_ensemble(x, w1, b1, w2, b2, *, batch_tile=None):
    """x: (B, H) f32; stacked params over M models:
       w1 (M, H, D), b1 (M, 1, D), w2 (M, D, 1), b2 (M, 1, 1).
       Returns (B,) = mean over models of each model's scalar output."""
    B, H = x.shape
    M, _, D = w1.shape
    N = M * D

    # Pack the ensemble into one wide layer; fold 1/M into W2 and b2.
    w1_packed = jnp.transpose(w1, (1, 0, 2)).reshape(H, N)   # col j = m*D + d
    b1_packed = b1.reshape(1, N)
    w2_packed = w2.reshape(1, N) * (1.0 / M)                 # pre-scaled by 1/M
    b2_mean = (jnp.sum(b2) * (1.0 / M)).reshape(1, 1)

    # Batch tiling: one "parallel" grid axis (megacore-shardable). For the
    # small test shapes this is a single grid step.
    if batch_tile is None:
        batch_tile = B if B <= 512 else 512
    assert B % batch_tile == 0, "batch must divide evenly into tiles"
    grid = (B // batch_tile,)

    out = pl.pallas_call(
        ensemble_kernel,
        out_shape=jax.ShapeDtypeStruct((B, 1), jnp.float32),
        grid=grid,
        in_specs=[
            pl.BlockSpec((batch_tile, H), lambda i: (i, 0)),  # x tile
            pl.BlockSpec((H, N), lambda i: (0, 0)),           # packed W1 (resident)
            pl.BlockSpec((1, N), lambda i: (0, 0)),           # packed b1
            pl.BlockSpec((1, N), lambda i: (0, 0)),           # packed W2 / M
            pl.BlockSpec((1, 1), lambda i: (0, 0)),           # mean(b2)
        ],
        out_specs=pl.BlockSpec((batch_tile, 1), lambda i: (i, 0)),
        compiler_params=pltpu.CompilerParams(
            dimension_semantics=("parallel",),  # batch axis: independent tiles
        ),
    )(x, w1_packed, b1_packed, w2_packed, b2_mean)

    return out[:, 0]  # squeeze -> (B,)


def reference(x, w1, b1, w2, b2):
    # Pure-JAX reference of the PyTorch forward.
    def one(i):
        h = jnp.maximum(x @ w1[i] + b1[i], 0.0)
        return (h @ w2[i] + b2[i])[:, 0]
    ys = jnp.stack([one(i) for i in range(w1.shape[0])])  # (M, B)
    return ys.mean(axis=0)


if __name__ == "__main__":
    B, H, D, M = 8, 32, 16, 4  # batch, hidden-in, hidden-mid, num ensemble models

    key = jax.random.PRNGKey(0)
    kx, k1, k2, k3, k4 = jax.random.split(key, 5)

    x = jax.random.normal(kx, (B, H), dtype=jnp.float32)
    w1 = jax.random.normal(k1, (M, H, D), dtype=jnp.float32) * 0.1
    b1 = jax.random.normal(k2, (M, 1, D), dtype=jnp.float32) * 0.1
    w2 = jax.random.normal(k3, (M, D, 1), dtype=jnp.float32) * 0.1
    b2 = jax.random.normal(k4, (M, 1, 1), dtype=jnp.float32) * 0.1

    out = averaging_ensemble(x, w1, b1, w2, b2)
    out = jax.block_until_ready(out)

    ref = reference(x, w1, b1, w2, b2)
    assert out.shape == (B,)
    assert jnp.allclose(out, ref, atol=1e-5, rtol=1e-5), (out, ref)

    print("KERNEL_OK")
</pallas_src>

<mosaic_0001>
module attributes {stable_mosaic.version = 11 : i64} {
  func.func @ensemble_kernel(%arg0: i32, %arg1: memref<8x32xf32, #tpu.memory_space<vmem>>, %arg2: memref<32x64xf32, #tpu.memory_space<vmem>>, %arg3: memref<1x64xf32, #tpu.memory_space<vmem>>, %arg4: memref<1x64xf32, #tpu.memory_space<vmem>>, %arg5: memref<1x1xf32, #tpu.memory_space<vmem>>, %arg6: memref<8x1xf32, #tpu.memory_space<vmem>>) attributes {dimension_semantics = [#tpu.dimension_semantics<parallel>], iteration_bounds = array<i64: 1>, scalar_prefetch = 0 : i64, scratch_operands = 0 : i64, tpu.core_type = #tpu.core_type<tc>, window_params = [{transform_indices = @transform_0, window_bounds = array<i64: 8, 32>}, {pipeline_mode = #tpu.pipeline_mode<synchronous>, transform_indices = @transform_1, window_bounds = array<i64: 32, 64>}, {pipeline_mode = #tpu.pipeline_mode<synchronous>, transform_indices = @transform_2, window_bounds = array<i64: 1, 64>}, {pipeline_mode = #tpu.pipeline_mode<synchronous>, transform_indices = @transform_3, window_bounds = array<i64: 1, 64>}, {pipeline_mode = #tpu.pipeline_mode<synchronous>, transform_indices = @transform_4, window_bounds = array<i64: 1, 1>}, {transform_indices = @transform_5, window_bounds = array<i64: 8, 1>}]} {
    %c0 = arith.constant 0 : index
    %c0_0 = arith.constant 0 : index
    %0 = vector.load %arg1[%c0, %c0_0] : memref<8x32xf32, #tpu.memory_space<vmem>>, vector<8x32xf32>
    %c0_1 = arith.constant 0 : index
    %c0_2 = arith.constant 0 : index
    %1 = vector.load %arg2[%c0_1, %c0_2] : memref<32x64xf32, #tpu.memory_space<vmem>>, vector<32x64xf32>
    %cst = arith.constant dense<0.000000e+00> : vector<8x64xf32>
    %2 = tpu.matmul %0, %1, %cst {dimension_numbers = #tpu.dot_dimension_numbers<[1], [0], [0], [1], [0, 0, 1, 1], [], []>} : vector<8x32xf32>, vector<32x64xf32>, vector<8x64xf32> -> vector<8x64xf32>
    %c0_3 = arith.constant 0 : index
    %c0_4 = arith.constant 0 : index
    %3 = vector.load %arg3[%c0_3, %c0_4] : memref<1x64xf32, #tpu.memory_space<vmem>>, vector<1x64xf32>
    %4 = vector.broadcast %3 : vector<1x64xf32> to vector<8x64xf32>
    %5 = arith.addf %2, %4 : vector<8x64xf32>
    %cst_5 = arith.constant 0.000000e+00 : f32
    %6 = vector.broadcast %cst_5 : f32 to vector<8x64xf32>
    %7 = arith.maximumf %5, %6 : vector<8x64xf32>
    %c0_6 = arith.constant 0 : index
    %c0_7 = arith.constant 0 : index
    %8 = vector.load %arg4[%c0_6, %c0_7] : memref<1x64xf32, #tpu.memory_space<vmem>>, vector<1x64xf32>
    %9 = vector.broadcast %8 : vector<1x64xf32> to vector<8x64xf32>
    %10 = arith.mulf %7, %9 : vector<8x64xf32>
    %cst_8 = arith.constant dense<0.000000e+00> : vector<8xf32>
    %11 = vector.multi_reduction <add>, %10, %cst_8 [1] : vector<8x64xf32> to vector<8xf32>
    %12 = vector.shape_cast %11 : vector<8xf32> to vector<8x1xf32>
    %c0_9 = arith.constant 0 : index
    %c0_10 = arith.constant 0 : index
    %13 = vector.load %arg5[%c0_9, %c0_10] : memref<1x1xf32, #tpu.memory_space<vmem>>, vector<1x1xf32>
    %14 = vector.broadcast %13 : vector<1x1xf32> to vector<8x1xf32>
    %15 = arith.addf %12, %14 : vector<8x1xf32>
    %c0_11 = arith.constant 0 : index
    %c0_12 = arith.constant 0 : index
    %16 = vector.load %arg6[%c0_11, %c0_12] : memref<8x1xf32, #tpu.memory_space<vmem>>, vector<8x1xf32>
    tpu.vector_store %arg6[%c0_11, %c0_12], %15 {strides = array<i32>} : memref<8x1xf32, #tpu.memory_space<vmem>>, vector<8x1xf32>,
    return
  }
  func.func @transform_0(%arg0: i32) -> (i32, i32) {
    %c0_i32 = arith.constant 0 : i32
    %c0_i32_0 = arith.constant 0 : i32
    return %arg0, %c0_i32 : i32, i32
  }
  func.func @transform_1(%arg0: i32) -> (i32, i32) {
    %c0_i32 = arith.constant 0 : i32
    %c0_i32_0 = arith.constant 0 : i32
    %c0_i32_1 = arith.constant 0 : i32
    return %c0_i32, %c0_i32_0 : i32, i32
  }
  func.func @transform_2(%arg0: i32) -> (i32, i32) {
    %c0_i32 = arith.constant 0 : i32
    %c0_i32_0 = arith.constant 0 : i32
    %c0_i32_1 = arith.constant 0 : i32
    return %c0_i32, %c0_i32_0 : i32, i32
  }
  func.func @transform_3(%arg0: i32) -> (i32, i32) {
    %c0_i32 = arith.constant 0 : i32
    %c0_i32_0 = arith.constant 0 : i32
    %c0_i32_1 = arith.constant 0 : i32
    return %c0_i32, %c0_i32_0 : i32, i32
  }
  func.func @transform_4(%arg0: i32) -> (i32, i32) {
    %c0_i32 = arith.constant 0 : i32
    %c0_i32_0 = arith.constant 0 : i32
    %c0_i32_1 = arith.constant 0 : i32
    return %c0_i32, %c0_i32_0 : i32, i32
  }
  func.func @transform_5(%arg0: i32) -> (i32, i32) {
    %c0_i32 = arith.constant 0 : i32
    %c0_i32_0 = arith.constant 0 : i32
    return %arg0, %c0_i32 : i32, i32
  }
}

</mosaic_0001>

<llo_original>
// kernel: tpu_custom_call.1
$region0: #{tpu_custom_call.1}
  #allocation0 [shape = 'u32[]', space=smem, size = 0x4, offset = 0x4, fixed_abs, tag = 'smem constant byte address 0x4 - core index']
  #allocation1 [shape = 'u32[72,128]{1,0:T(1,128)}', space=vmem, size = 0x9000, scoped, tag = 'internal scratch']
  #allocation2 [shape = 'f32[1,1]{1,0:T(1,128)S(1)}', space=vmem, size = 0x200, scoped, tag = 'scoped memory for tpu_custom_call.1']
  %s0 = inlined_call_operand.hbm [shape: f32[8,32], index: 0, kind: input, shape index: {}]
  %s1 = inlined_call_operand.hbm [shape: f32[32,64], index: 1, kind: input, shape index: {}]
  %s2 = inlined_call_operand.vmem [shape: f32[1,64], index: 2, kind: input, shape index: {}]
  %s3 = inlined_call_operand.vmem [shape: f32[1,64], index: 3, kind: input, shape index: {}]
  %s4 = inlined_call_operand.<no memory space> [shape: f32[1,1], index: 4, kind: input, shape index: {}]
  %s5 = inlined_call_operand.vmem [shape: f32[8,1], index: 5, kind: output, shape index: {}]
  %s6 = sld [smem:[#allocation0]]
  $region38: #{tpu_custom_call.1} parent=0
    _
  %s8 = ssub.s32 1, %s6
  %s9 = scalar_select 0, %s8, %s6
  %v10 = vstv %s4
  %11 = vst [vmem:[#allocation2] sm:$0x1] %v10
  $region1: #{tpu_custom_call.1} parent=0
    #allocation3 [shape = 'u8[4096]{0}', space=vmem, size = 0x1000, scoped, tag = 'input window, operand 0, single buffered']
    #allocation4 [shape = 's32[1]{0}', space=sflag, size = 0x4, scoped, tag = 'scoped memory for tpu_custom_call.1']
    #allocation5 [shape = 'u8[16384]{0}', space=vmem, size = 0x4000, scoped, tag = 'input window, operand 1, single buffered']
    #allocation6 [shape = 's32[1]{0}', space=sflag, size = 0x4, scoped, tag = 'scoped memory for tpu_custom_call.1']
    %12 = vsyncpa [#allocation4], 0
    %13 = vsyncpa [#allocation6], 0
    // Predicated region
    $region2: #{tpu_custom_call.1} parent=1 // pred_check
      _
    $region3: #{tpu_custom_call.1} parent=1 // pred_check_branch
      %15 = sbr.rel (0) target = $region5
    $region4: #{tpu_custom_call.1} parent=1 // pred_region
      %17 = vsyncadd [#allocation4], 0
      %s19 = sshll.u32 %s0, 4
      %s20 = int_to_ptr.hbm [resolvable:$true] %s19
      %s21 = sshll.u32 [#allocation3], 4
      %s22 = int_to_ptr.vmem [resolvable:$true] %s21
      %24 = dma.hbm_to_vmem [thread:$0]  %s20, 128, %s22, [#allocation4]
    $region5: #{tpu_custom_call.1} parent=1 // pred_fallthru
      _
    // Predicated region
    $region6: #{tpu_custom_call.1} parent=1 // pred_check
      _
    $region7: #{tpu_custom_call.1} parent=1 // pred_check_branch
      %26 = sbr.rel (0) target = $region9
    $region8: #{tpu_custom_call.1} parent=1 // pred_region
      %28 = vsyncadd [#allocation6], 0
      %s29 = sshll.u32 %s1, 4
      %s30 = int_to_ptr.hbm [resolvable:$true] %s29
      %s31 = sshll.u32 [#allocation5], 4
      %s32 = int_to_ptr.vmem [resolvable:$true] %s31
      %37 = dma.hbm_to_vmem [thread:$0]  %s30, 512, %s32, [#allocation6], 128, 128, 8
    $region9: #{tpu_custom_call.1} parent=1 // pred_fallthru
      _
    // Predicated region
    $region10: #{tpu_custom_call.1} parent=1 // pred_check
      _
    $region11: #{tpu_custom_call.1} parent=1 // pred_check_branch
      %39 = sbr.rel (0) target = $region13
    $region12: #{tpu_custom_call.1} parent=1 // pred_region
      _
    $region13: #{tpu_custom_call.1} parent=1 // pred_fallthru
      _
    // Predicated region
    $region14: #{tpu_custom_call.1} parent=1 // pred_check
      _
    $region15: #{tpu_custom_call.1} parent=1 // pred_check_branch
      %41 = sbr.rel (0) target = $region17
    $region16: #{tpu_custom_call.1} parent=1 // pred_region
      _
    $region17: #{tpu_custom_call.1} parent=1 // pred_fallthru
      _
    // Predicated region
    $region18: #{tpu_custom_call.1} parent=1 // pred_check
      _
    $region19: #{tpu_custom_call.1} parent=1 // pred_check_branch
      %43 = sbr.rel (0) target = $region21
    $region20: #{tpu_custom_call.1} parent=1 // pred_region
      _
    $region21: #{tpu_custom_call.1} parent=1 // pred_fallthru
      _
    // Predicated region
    $region22: #{tpu_custom_call.1} parent=1 // pred_check
      _
    $region23: #{tpu_custom_call.1} parent=1 // pred_check_branch
      %45 = sbr.rel (0) target = $region25
    $region24: #{tpu_custom_call.1} parent=1 // pred_region
      %47 = dma.done [#allocation4], 128
    $region25: #{tpu_custom_call.1} parent=1 // pred_fallthru
      _
    // Predicated region
    $region26: #{tpu_custom_call.1} parent=1 // pred_check
      _
    $region27: #{tpu_custom_call.1} parent=1 // pred_check_branch
      %49 = sbr.rel (0) target = $region29
    $region28: #{tpu_custom_call.1} parent=1 // pred_region
      %51 = dma.done [#allocation6], 512
    $region29: #{tpu_custom_call.1} parent=1 // pred_fallthru
      _
    %v52 = vld [vmem:[#allocation3] sm:$0xff]
    %v53 = vld [vmem:[#allocation5] sm:$0xff]
    %v54 = vld [vmem:[#allocation5 + $0x8] sm:$0xff]
    %v55 = vld [vmem:[#allocation5 + $0x10] sm:$0xff]
    %v56 = vld [vmem:[#allocation5 + $0x18] sm:$0xff]
    %v57 = vld [vmem:[%s2] sm:$0x1]
    %v59 = vperm.slane %v57, 0
    %vm61 = vcmask 261120
    %v63 = vsel %vm61, %v52, 0
    %65 = vmatpush.msra.mxu0 0.0
    %66 = vmatpush.msra.mxu0 0.0
    %67 = vmatpush.msra.mxu0 0.0
    %68 = vmatpush.msra.mxu0 0.0
    %69 = vmatpush.msra.mxu0 0.0
    %70 = vmatpush.msra.mxu0 0.0
    %71 = vmatpush.msra.mxu0 0.0
    %72 = vmatpush.msra.mxu0 0.0
    %73 = vmatpush.msra.mxu0 0.0
    %74 = vmatpush.msra.mxu0 0.0
    %75 = vmatpush.msra.mxu0 0.0
    %76 = vmatpush.msra.mxu0 0.0
    %77 = vmatpush.msra.mxu0 %v56
    %78 = vmatpush.msra.mxu0 %v55
    %79 = vmatpush.msra.mxu0 %v54
    %80 = vmatpush.msra.mxu0 %v53
    %81 = vmatmul.f32.gmra.mxu0 %v63
    %v82 = vpop.f32.mrf.mxu0
    %v83 = vadd.f32 %v59, %v82
    %84 = vdwg.mxu0
    %v85 = vmax.f32 %v83, 0.0
    %v86 = vld [vmem:[%s3] sm:$0x1]
    %v88 = vperm.slane %v86, 0
    %v90 = vmul.f32 %v85, %v88
    %vm91 = vcmask 523264
    %v92 = vsel %vm91, %v90, 0.0
    %93 = vadd.xlane.f32.xlu0 %v92
    %v94 = vpop.xlane.xlu0 %93
    %v95 = vld [vmem:[#allocation2] sm:$0x1]
    %v97 = vperm.slane %v95, 0
    %v99 = vadd.f32 %v94, %v97
    %vm100 = vcmask 7168
    %101 = vst.msk [vmem:[%s5] sm:$0xff] %vm100, %v99
    // Predicated region
    $region30: #{tpu_custom_call.1} parent=1 // pred_check
      _
    $region31: #{tpu_custom_call.1} parent=1 // pred_check_branch
      %103 = sbr.rel (0) target = $region33
    $region32: #{tpu_custom_call.1} parent=1 // pred_region
      _
    $region33: #{tpu_custom_call.1} parent=1 // pred_fallthru
      _
    // Predicated region
    $region34: #{tpu_custom_call.1} parent=1 // pred_check
      _
    $region35: #{tpu_custom_call.1} parent=1 // pred_check_branch
      %105 = sbr.rel (0) target = $region37
    $region36: #{tpu_custom_call.1} parent=1 // pred_region
      _
    $region37: #{tpu_custom_call.1} parent=1 // pred_fallthru
      _
    %106 = vsyncpa [#allocation4], 1
    %107 = vsyncpa [#allocation6], 1

</llo_original>
